<compile_context>
chip_gen: v6e
topology: v6e:2x2x1
jax: 0.10.0
libtpu: 0.0.40
codegen_flags: <defaults>
</compile_context>

<pallas_src>
import jax
import jax.numpy as jnp
from jax.experimental import pallas as pl
from jax.experimental.pallas import tpu as pltpu

EPS = 1e-5


def _vmem_capacity_bytes():
    try:
        return int(pltpu.get_tpu_info().vmem_capacity_bytes)
    except Exception:
        return 64 * 1024 * 1024  # conservative fallback (v7x per-TensorCore)


def _is_multi_tc():
    # v4 / v5p / v7x have 2 TensorCores per chip; v5e / v6e have 1.
    try:
        kind = jax.devices()[0].device_kind.lower()
        return any(t in kind for t in ("v7", "v4", "v5p", "v5 p"))
    except Exception:
        return False


def _pick_th(Ho, Wo, target_rows):
    """Largest divisor t_h of Ho with t_h*Wo <= target_rows and t_h*Wo % 128 == 0
    (lane-dense, aligned out block); falls back to the full Ho extent."""
    if Ho * Wo <= target_rows:
        return Ho
    for d in range(Ho, 0, -1):
        if Ho % d == 0 and d * Wo <= target_rows and (d * Wo) % 128 == 0:
            return d
    return Ho


def _patch_merging_kernel(x_ref, w_ref, b_ref, o_ref):
    # x_ref : (t_h, 2, Wo, 2*C)   NHWC view; dim1 = kh, last dim = (kw, c)
    # w_ref : (4*C, tn)           conv weight flattened (kh, kw, c)-major, gamma folded in
    # b_ref : (1, tn)             beta folded through the conv weight (f32)
    # o_ref : (1, tn, t_h*Wo)     channels-first output tile (no wrapper output transpose)
    t_h, _, Wo, C2 = x_ref.shape
    C = C2 // 2
    rows = t_h * Wo

    x = x_ref[...]                                   # single tile load
    parts = []
    for kh in range(2):
        # (t_h, Wo, 2C) -> (rows, 2C): free sublane merge when Wo % 8 == 0
        xk = x[:, kh, :, :].reshape(rows, C2).astype(jnp.float32)
        for kw in range(2):
            xs = xk[:, kw * C:(kw + 1) * C]          # (rows, C) static lane slice
            u = jnp.mean(xs, axis=-1, keepdims=True)
            d = xs - u
            v = jnp.mean(d * d, axis=-1, keepdims=True)
            parts.append(d * jax.lax.rsqrt(v + EPS))

    # one fused (rows, 4C) x (4C, tn) MXU dot instead of 4 underfilled K=C dots
    lhs = jnp.concatenate(parts, axis=-1)            # (rows, 4C), (kh, kw, c) order
    acc = jnp.dot(lhs.astype(w_ref.dtype), w_ref[...],
                  preferred_element_type=jnp.float32)
    acc = acc + b_ref[...].astype(jnp.float32)
    # transpose the small tile in VMEM so the HBM output is already channels-first
    o_ref[0] = acc.T.astype(o_ref.dtype)


def patch_merging(x_nchw, ln_weight, ln_bias, conv_weight, *,
                  tile_rows=None, tile_co=1024):
    """x_nchw: (B, C, H, W); conv_weight: (Co, C, 2, 2) (PyTorch OIHW). Returns NCHW."""
    B, C, H, W = x_nchw.shape
    Co = conv_weight.shape[0]
    assert H % 2 == 0 and W % 2 == 0
    Ho, Wo = H // 2, W // 2

    # --- the only remaining layout change: NCHW -> NHWC (input side) ----------------------
    # TODO(synk): remove if the surrounding network adopts NHWC end-to-end.
    x_nhwc = jnp.transpose(x_nchw, (0, 2, 3, 1))           # (B, H, W, C)
    x4 = x_nhwc.reshape(B * Ho, 2, Wo, 2 * C)              # free reshape; rows=(b,ho)

    # --- fold LayerNorm affine into the conv weight / bias --------------------------------
    # conv weight (Co, C, kh, kw) -> (kh, kw, C, Co) -> (4C, Co)
    w_flat = jnp.transpose(conv_weight, (2, 3, 1, 0)).reshape(4 * C, Co).astype(jnp.float32)
    gamma4 = jnp.tile(ln_weight.astype(jnp.float32), 4)    # (4C,)
    beta4 = jnp.tile(ln_bias.astype(jnp.float32), 4)       # (4C,)
    w_fold = (gamma4[:, None] * w_flat).astype(conv_weight.dtype)   # (4C, Co)
    b_fold = (beta4[None, :] @ w_flat).reshape(1, Co)               # (1, Co), f32

    x_isz = jnp.dtype(x_nchw.dtype).itemsize
    w_isz = jnp.dtype(conv_weight.dtype).itemsize
    vmem_cap = _vmem_capacity_bytes()
    vmem_budget = int(0.75 * vmem_cap)

    # --- Co tiling: keep the full folded weight resident unless it is genuinely large -----
    tn = Co
    if 4 * C * Co * w_isz > vmem_budget // 4:
        for d in range(min(tile_co, Co), 127, -1):
            if Co % d == 0 and d % 128 == 0:
                tn = d
                break

    # --- row tiling: ~512 output rows on 128 MiB VMEM parts, ~256 on 64 MiB (v7x) ---------
    target_rows = tile_rows if tile_rows is not None else (
        512 if vmem_cap >= 96 * 1024 * 1024 else 256)

    def estimate(th):
        rows = th * Wo
        est = 2 * (th * 2 * Wo * 2 * C * x_isz      # x tile (double-buffered)
                   + 4 * C * tn * w_isz             # weight tile
                   + tn * 4                         # bias row
                   + rows * tn * x_isz)             # out tile (double-buffered)
        est += rows * (8 * C + 2 * tn) * 4          # in-kernel f32 temporaries (rough)
        return est

    t_h = _pick_th(Ho, Wo, target_rows)
    while estimate(t_h) > vmem_budget and target_rows > 128:
        target_rows //= 2
        t_h = _pick_th(Ho, Wo, target_rows)

    # split rows further only when a 2nd TensorCore can actually pick up the extra block
    if _is_multi_tc() and B * (Ho // t_h) * (Co // tn) < 2:
        for d in range(Ho // 2, 0, -1):
            if Ho % d == 0 and (d * Wo) % 128 == 0:
                t_h = d
                break

    rows_blk = t_h * Wo
    n_i = Ho // t_h
    grid = (B, n_i, Co // tn)

    vmem_limit = int(min(vmem_budget,
                         max(32 * 1024 * 1024, int(1.3 * estimate(t_h)))))

    out3 = pl.pallas_call(
        _patch_merging_kernel,
        out_shape=jax.ShapeDtypeStruct((B, Co, Ho * Wo), x_nchw.dtype),
        grid_spec=pltpu.PrefetchScalarGridSpec(
            num_scalar_prefetch=0,
            grid=grid,
            in_specs=[
                pl.BlockSpec((t_h, 2, Wo, 2 * C),
                             lambda b, i, j: (b * n_i + i, 0, 0, 0)),
                pl.BlockSpec((4 * C, tn), lambda b, i, j: (0, j)),
                pl.BlockSpec((1, tn), lambda b, i, j: (0, j)),
            ],
            out_specs=pl.BlockSpec((1, tn, rows_blk), lambda b, i, j: (b, j, i)),
        ),
        compiler_params=pltpu.CompilerParams(
            dimension_semantics=("parallel", "parallel", "parallel"),
            vmem_limit_bytes=vmem_limit,
        ),
    )(x4, w_fold, b_fold)

    # (B, Co, Ho*Wo) -> (B, Co, Ho, Wo): free reshape, already channels-first (NCHW).
    return out3.reshape(B, Co, Ho, Wo)


def _reference(x_nchw, ln_weight, ln_bias, conv_weight):
    # pure-JAX reference matching the PyTorch forward exactly
    u = x_nchw.mean(axis=1, keepdims=True)
    s = ((x_nchw - u) ** 2).mean(axis=1, keepdims=True)
    xn = (x_nchw - u) / jnp.sqrt(s + EPS)
    xn = ln_weight[None, :, None, None] * xn + ln_bias[None, :, None, None]
    return jax.lax.conv_general_dilated(
        xn, conv_weight, window_strides=(2, 2), padding="VALID",
        dimension_numbers=("NCHW", "OIHW", "NCHW"),
    )


if __name__ == "__main__":
    B, C, H, W = 2, 4, 16, 16
    OUT_DIM = 8

    key = jax.random.PRNGKey(0)
    kx, kw, kg, kb = jax.random.split(key, 4)

    x = jax.random.normal(kx, (B, C, H, W), dtype=jnp.float32)
    # parameters per module __init__ (LayerNorm: ones / zeros)
    ln_weight = jnp.ones((C,), dtype=jnp.float32)
    ln_bias = jnp.zeros((C,), dtype=jnp.float32)
    conv_weight = 0.1 * jax.random.normal(kw, (OUT_DIM, C, 2, 2), dtype=jnp.float32)

    y = jax.block_until_ready(patch_merging(x, ln_weight, ln_bias, conv_weight))
    y_ref = _reference(x, ln_weight, ln_bias, conv_weight)
    assert y.shape == (B, OUT_DIM, H // 2, W // 2)
    assert float(jnp.max(jnp.abs(y - y_ref))) < 1e-4

    # extra check with a non-trivial LayerNorm affine to exercise the gamma/beta fold
    g2 = 1.0 + 0.1 * jax.random.normal(kg, (C,), dtype=jnp.float32)
    b2 = 0.1 * jax.random.normal(kb, (C,), dtype=jnp.float32)
    y2 = jax.block_until_ready(patch_merging(x, g2, b2, conv_weight))
    y2_ref = _reference(x, g2, b2, conv_weight)
    assert float(jnp.max(jnp.abs(y2 - y2_ref))) < 1e-4

    print("KERNEL_OK")
</pallas_src>

<mosaic_0001>
module attributes {stable_mosaic.version = 11 : i64} {
  func.func @_patch_merging_kernel(%arg0: i32, %arg1: i32, %arg2: i32, %arg3: memref<8x2x8x8xf32, #tpu.memory_space<vmem>>, %arg4: memref<16x8xf32, #tpu.memory_space<vmem>>, %arg5: memref<1x8xf32, #tpu.memory_space<vmem>>, %arg6: memref<1x8x64xf32, #tpu.memory_space<vmem>>) attributes {dimension_semantics = [#tpu.dimension_semantics<parallel>, #tpu.dimension_semantics<parallel>, #tpu.dimension_semantics<parallel>], iteration_bounds = array<i64: 2, 1, 1>, scalar_prefetch = 0 : i64, scratch_operands = 0 : i64, tpu.core_type = #tpu.core_type<tc>, window_params = [{transform_indices = @transform_0, window_bounds = array<i64: 8, 2, 8, 8>}, {transform_indices = @transform_1, window_bounds = array<i64: 16, 8>}, {transform_indices = @transform_2, window_bounds = array<i64: 1, 8>}, {transform_indices = @transform_3, window_bounds = array<i64: 1, 8, 64>}]} {
    %c0 = arith.constant 0 : index
    %c0_0 = arith.constant 0 : index
    %c0_1 = arith.constant 0 : index
    %c0_2 = arith.constant 0 : index
    %0 = vector.load %arg3[%c0, %c0_0, %c0_1, %c0_2] : memref<8x2x8x8xf32, #tpu.memory_space<vmem>>, vector<8x2x8x8xf32>
    %1 = vector.extract_strided_slice %0 {offsets = [0, 0, 0, 0], sizes = [8, 1, 8, 8], strides = [1, 1, 1, 1]} : vector<8x2x8x8xf32> to vector<8x1x8x8xf32>
    %2 = vector.shape_cast %1 : vector<8x1x8x8xf32> to vector<8x8x8xf32>
    %3 = vector.shape_cast %2 : vector<8x8x8xf32> to vector<64x8xf32>
    %4 = vector.extract_strided_slice %3 {offsets = [0, 0], sizes = [64, 4], strides = [1, 1]} : vector<64x8xf32> to vector<64x4xf32>
    %cst = arith.constant dense<0.000000e+00> : vector<64xf32>
    %5 = vector.multi_reduction <add>, %4, %cst [1] : vector<64x4xf32> to vector<64xf32>
    %6 = vector.shape_cast %5 : vector<64xf32> to vector<64x1xf32>
    %cst_3 = arith.constant 4.000000e+00 : f32
    %7 = vector.broadcast %cst_3 : f32 to vector<64x1xf32>
    %8 = arith.divf %6, %7 : vector<64x1xf32>
    %9 = vector.broadcast %8 : vector<64x1xf32> to vector<64x4xf32>
    %10 = arith.subf %4, %9 : vector<64x4xf32>
    %11 = arith.mulf %10, %10 : vector<64x4xf32>
    %cst_4 = arith.constant dense<0.000000e+00> : vector<64xf32>
    %12 = vector.multi_reduction <add>, %11, %cst_4 [1] : vector<64x4xf32> to vector<64xf32>
    %13 = vector.shape_cast %12 : vector<64xf32> to vector<64x1xf32>
    %cst_5 = arith.constant 4.000000e+00 : f32
    %14 = vector.broadcast %cst_5 : f32 to vector<64x1xf32>
    %15 = arith.divf %13, %14 : vector<64x1xf32>
    %cst_6 = arith.constant 9.99999974E-6 : f32
    %16 = vector.broadcast %cst_6 : f32 to vector<64x1xf32>
    %17 = arith.addf %15, %16 : vector<64x1xf32>
    %18 = math.rsqrt %17 : vector<64x1xf32>
    %19 = vector.broadcast %18 : vector<64x1xf32> to vector<64x4xf32>
    %20 = arith.mulf %10, %19 : vector<64x4xf32>
    %21 = vector.extract_strided_slice %3 {offsets = [0, 4], sizes = [64, 4], strides = [1, 1]} : vector<64x8xf32> to vector<64x4xf32>
    %cst_7 = arith.constant dense<0.000000e+00> : vector<64xf32>
    %22 = vector.multi_reduction <add>, %21, %cst_7 [1] : vector<64x4xf32> to vector<64xf32>
    %23 = vector.shape_cast %22 : vector<64xf32> to vector<64x1xf32>
    %cst_8 = arith.constant 4.000000e+00 : f32
    %24 = vector.broadcast %cst_8 : f32 to vector<64x1xf32>
    %25 = arith.divf %23, %24 : vector<64x1xf32>
    %26 = vector.broadcast %25 : vector<64x1xf32> to vector<64x4xf32>
    %27 = arith.subf %21, %26 : vector<64x4xf32>
    %28 = arith.mulf %27, %27 : vector<64x4xf32>
    %cst_9 = arith.constant dense<0.000000e+00> : vector<64xf32>
    %29 = vector.multi_reduction <add>, %28, %cst_9 [1] : vector<64x4xf32> to vector<64xf32>
    %30 = vector.shape_cast %29 : vector<64xf32> to vector<64x1xf32>
    %cst_10 = arith.constant 4.000000e+00 : f32
    %31 = vector.broadcast %cst_10 : f32 to vector<64x1xf32>
    %32 = arith.divf %30, %31 : vector<64x1xf32>
    %cst_11 = arith.constant 9.99999974E-6 : f32
    %33 = vector.broadcast %cst_11 : f32 to vector<64x1xf32>
    %34 = arith.addf %32, %33 : vector<64x1xf32>
    %35 = math.rsqrt %34 : vector<64x1xf32>
    %36 = vector.broadcast %35 : vector<64x1xf32> to vector<64x4xf32>
    %37 = arith.mulf %27, %36 : vector<64x4xf32>
    %38 = vector.extract_strided_slice %0 {offsets = [0, 1, 0, 0], sizes = [8, 1, 8, 8], strides = [1, 1, 1, 1]} : vector<8x2x8x8xf32> to vector<8x1x8x8xf32>
    %39 = vector.shape_cast %38 : vector<8x1x8x8xf32> to vector<8x8x8xf32>
    %40 = vector.shape_cast %39 : vector<8x8x8xf32> to vector<64x8xf32>
    %41 = vector.extract_strided_slice %40 {offsets = [0, 0], sizes = [64, 4], strides = [1, 1]} : vector<64x8xf32> to vector<64x4xf32>
    %cst_12 = arith.constant dense<0.000000e+00> : vector<64xf32>
    %42 = vector.multi_reduction <add>, %41, %cst_12 [1] : vector<64x4xf32> to vector<64xf32>
    %43 = vector.shape_cast %42 : vector<64xf32> to vector<64x1xf32>
    %cst_13 = arith.constant 4.000000e+00 : f32
    %44 = vector.broadcast %cst_13 : f32 to vector<64x1xf32>
    %45 = arith.divf %43, %44 : vector<64x1xf32>
    %46 = vector.broadcast %45 : vector<64x1xf32> to vector<64x4xf32>
    %47 = arith.subf %41, %46 : vector<64x4xf32>
    %48 = arith.mulf %47, %47 : vector<64x4xf32>
    %cst_14 = arith.constant dense<0.000000e+00> : vector<64xf32>
    %49 = vector.multi_reduction <add>, %48, %cst_14 [1] : vector<64x4xf32> to vector<64xf32>
    %50 = vector.shape_cast %49 : vector<64xf32> to vector<64x1xf32>
    %cst_15 = arith.constant 4.000000e+00 : f32
    %51 = vector.broadcast %cst_15 : f32 to vector<64x1xf32>
    %52 = arith.divf %50, %51 : vector<64x1xf32>
    %cst_16 = arith.constant 9.99999974E-6 : f32
    %53 = vector.broadcast %cst_16 : f32 to vector<64x1xf32>
    %54 = arith.addf %52, %53 : vector<64x1xf32>
    %55 = math.rsqrt %54 : vector<64x1xf32>
    %56 = vector.broadcast %55 : vector<64x1xf32> to vector<64x4xf32>
    %57 = arith.mulf %47, %56 : vector<64x4xf32>
    %58 = vector.extract_strided_slice %40 {offsets = [0, 4], sizes = [64, 4], strides = [1, 1]} : vector<64x8xf32> to vector<64x4xf32>
    %cst_17 = arith.constant dense<0.000000e+00> : vector<64xf32>
    %59 = vector.multi_reduction <add>, %58, %cst_17 [1] : vector<64x4xf32> to vector<64xf32>
    %60 = vector.shape_cast %59 : vector<64xf32> to vector<64x1xf32>
    %cst_18 = arith.constant 4.000000e+00 : f32
    %61 = vector.broadcast %cst_18 : f32 to vector<64x1xf32>
    %62 = arith.divf %60, %61 : vector<64x1xf32>
    %63 = vector.broadcast %62 : vector<64x1xf32> to vector<64x4xf32>
    %64 = arith.subf %58, %63 : vector<64x4xf32>
    %65 = arith.mulf %64, %64 : vector<64x4xf32>
    %cst_19 = arith.constant dense<0.000000e+00> : vector<64xf32>
    %66 = vector.multi_reduction <add>, %65, %cst_19 [1] : vector<64x4xf32> to vector<64xf32>
    %67 = vector.shape_cast %66 : vector<64xf32> to vector<64x1xf32>
    %cst_20 = arith.constant 4.000000e+00 : f32
    %68 = vector.broadcast %cst_20 : f32 to vector<64x1xf32>
    %69 = arith.divf %67, %68 : vector<64x1xf32>
    %cst_21 = arith.constant 9.99999974E-6 : f32
    %70 = vector.broadcast %cst_21 : f32 to vector<64x1xf32>
    %71 = arith.addf %69, %70 : vector<64x1xf32>
    %72 = math.rsqrt %71 : vector<64x1xf32>
    %73 = vector.broadcast %72 : vector<64x1xf32> to vector<64x4xf32>
    %74 = arith.mulf %64, %73 : vector<64x4xf32>
    %75 = tpu.concatenate %20, %37, %57, %74 in 1 : vector<64x4xf32>, vector<64x4xf32>, vector<64x4xf32>, vector<64x4xf32> -> vector<64x16xf32>
    %c0_22 = arith.constant 0 : index
    %c0_23 = arith.constant 0 : index
    %76 = vector.load %arg4[%c0_22, %c0_23] : memref<16x8xf32, #tpu.memory_space<vmem>>, vector<16x8xf32>
    %cst_24 = arith.constant dense<0.000000e+00> : vector<64x8xf32>
    %77 = tpu.matmul %75, %76, %cst_24 {dimension_numbers = #tpu.dot_dimension_numbers<[1], [0], [0], [1], [0, 0, 1, 1], [], []>} : vector<64x16xf32>, vector<16x8xf32>, vector<64x8xf32> -> vector<64x8xf32>
    %c0_25 = arith.constant 0 : index
    %c0_26 = arith.constant 0 : index
    %78 = vector.load %arg5[%c0_25, %c0_26] : memref<1x8xf32, #tpu.memory_space<vmem>>, vector<1x8xf32>
    %79 = vector.broadcast %78 : vector<1x8xf32> to vector<64x8xf32>
    %80 = arith.addf %77, %79 : vector<64x8xf32>
    %81 = tpu.transpose %80, [1, 0] : vector<64x8xf32> -> vector<8x64xf32>
    %c0_27 = arith.constant 0 : index
    %c0_28 = arith.constant 0 : index
    %c0_29 = arith.constant 0 : index
    %82 = vector.load %arg6[%c0_27, %c0_28, %c0_29] : memref<1x8x64xf32, #tpu.memory_space<vmem>>, vector<1x8x64xf32>
    %83 = vector.shape_cast %82 : vector<1x8x64xf32> to vector<8x64xf32>
    %84 = vector.shape_cast %81 : vector<8x64xf32> to vector<1x8x64xf32>
    tpu.vector_store %arg6[%c0_27, %c0_28, %c0_29], %84 {strides = array<i32>} : memref<1x8x64xf32, #tpu.memory_space<vmem>>, vector<1x8x64xf32>,
    return
  }
  func.func @transform_0(%arg0: i32, %arg1: i32, %arg2: i32) -> (i32, i32, i32, i32) {
    %c1_i32 = arith.constant 1 : i32
    %0 = arith.muli %arg0, %c1_i32 : i32
    %1 = arith.addi %0, %arg1 : i32
    %c0_i32 = arith.constant 0 : i32
    %c0_i32_0 = arith.constant 0 : i32
    %c0_i32_1 = arith.constant 0 : i32
    %c0_i32_2 = arith.constant 0 : i32
    return %1, %c0_i32, %c0_i32_0, %c0_i32_1 : i32, i32, i32, i32
  }
  func.func @transform_1(%arg0: i32, %arg1: i32, %arg2: i32) -> (i32, i32) {
    %c0_i32 = arith.constant 0 : i32
    %c0_i32_0 = arith.constant 0 : i32
    return %c0_i32, %arg2 : i32, i32
  }
  func.func @transform_2(%arg0: i32, %arg1: i32, %arg2: i32) -> (i32, i32) {
    %c0_i32 = arith.constant 0 : i32
    %c0_i32_0 = arith.constant 0 : i32
    return %c0_i32, %arg2 : i32, i32
  }
  func.func @transform_3(%arg0: i32, %arg1: i32, %arg2: i32) -> (i32, i32, i32) {
    %c0_i32 = arith.constant 0 : i32
    return %arg0, %arg2, %arg1 : i32, i32, i32
  }
}

</mosaic_0001>

<llo_original>
// kernel: tpu_custom_call.1
$region0: #{tpu_custom_call.1}
  #allocation0 [shape = 'u32[]', space=smem, size = 0x4, offset = 0x4, fixed_abs, tag = 'smem constant byte address 0x4 - core index']
  #allocation1 [shape = 'u32[144,128]{1,0:T(1,128)}', space=vmem, size = 0x12000, scoped, tag = 'internal scratch']
  %s0 = inlined_call_operand.vmem [shape: f32[16,2,8,8], index: 0, kind: input, shape index: {}]
  %s1 = inlined_call_operand.vmem [shape: f32[16,8], index: 1, kind: input, shape index: {}]
  %s2 = inlined_call_operand.vmem [shape: f32[1,8], index: 2, kind: input, shape index: {}]
  %s3 = inlined_call_operand.hbm [shape: f32[2,8,64], index: 3, kind: output, shape index: {}]
  %s4 = sld [smem:[#allocation0]]
  $region45: #{tpu_custom_call.1} parent=0
    _
  %s6 = ssub.s32 1, %s4
  %s7 = scalar_select 0, %s6, %s4
  $region1: #{tpu_custom_call.1} parent=0
    #allocation2 [shape = 'u8[8192]{0}', space=vmem, size = 0x2000, scoped, tag = 'output window, operand 0']
    #allocation3 [shape = 's32[2]{0}', space=sflag, size = 0x8, scoped, tag = 'scoped memory for tpu_custom_call.1']
    %8 = vsyncpa [#allocation3], 0
    %s9 = scalar_lea.sflag [#allocation3], 1
    %10 = vsyncpa %s9, 0
    loop: start=0, step=1, limit=4
    $region2: #{tpu_custom_call.1} parent=1 // loop_pre_header
      _
    $region3: #{tpu_custom_call.1} parent=1 // loop_header
      %s12 = sphi 0, %s16
      %p13 = scmp.ge.s32.totalorder %s12, 4
      %s19 = sphi 0, %s38
      %s20 = sphi 0, %s34
      %s21 = sphi 0, %s30
      %s22 = sphi 0, %s19
      %s23 = sphi 0, %s20
      %s24 = sphi 0, %s21
      %s25 = sphi 0, %s22
      %s26 = sphi 0, %s23
      %s27 = sphi 0, %s24
      %s43 = sphi 0, %s45
      %s46 = sphi 0, %s43
      %s47 = sphi 0, %s46
      %s63 = sphi 0, %s47
      %s69 = sphi 0, %s71
      %s72 = sphi 0, %s69
      %s73 = sphi 0, %s72
      %s89 = sphi 0, %s73
      %s95 = sphi 0, %s97
      %s98 = sphi 0, %s95
      %s99 = sphi 0, %s98
      %s115 = sphi 0, %s99
      %s125 = sphi 0, %s127
      %s128 = sphi 0, %s125
      %s129 = sphi 0, %s128
      %s145 = sphi 0, %s129
    $region4: #{tpu_custom_call.1} parent=1 // loop_header_branch
      %15 = sbr.rel (%p13) target = $region8
    $region5: #{tpu_custom_call.1} parent=1 // loop_body
      %s17 = ssub.s32 %s12, 1
      %s18 = ssub.s32 %s12, 2
      %s28 = sadd.s32 1, %s21
      %p29 = scmp.ge.s32.totalorder %s28, 1
      %s30 = scalar_select %p29, 0, %s28
      %s31 = sadd.s32 1, %s20
      %s32 = scalar_select %p29, %s31, %s20
      %p33 = scmp.ge.s32.totalorder %s32, 1
      %s34 = scalar_select %p33, 0, %s32
      %s35 = sadd.s32 1, %s19
      %s36 = scalar_select %p33, %s35, %s19
      %p37 = scmp.ge.s32.totalorder %s36, 2
      %s38 = scalar_select %p37, 0, %s36
      %s39 = sadd.s32 %s19, %s20
      %s40 = sadd.s32 %s38, %s34
      %s41 = ssub.s32 %s39, %s40
      %p42 = scmp.eq.s32.totalorder %s41, 0
      %s44 = sadd.s32 %s43, 1
      %s45 = scalar_select %p42, %s43, %s44
      %p48 = pneg %p42
      %p49 = scmp.eq.s32.totalorder %s12, 1
      %p50 = por %p48, %p49
      %p51 = scmp.ne.s32.totalorder %s43, %s46
      %p52 = scmp.eq.s32.totalorder %s12, 0
      %p53 = por %p51, %p52
      %p54 = scmp.ne.s32.totalorder %s43, %s46
      %p55 = scmp.eq.s32.totalorder %s17, 1
      %p56 = por %p54, %p55
      %p57 = scmp.ne.s32.totalorder %s46, %s47
      %p58 = scmp.eq.s32.totalorder %s17, 0
      %p59 = por %p57, %p58
      %p60 = scmp.ne.s32.totalorder %s46, %s47
      %p61 = scmp.eq.s32.totalorder %s18, 1
      %p62 = por %p60, %p61
      %p64 = scmp.ne.s32.totalorder %s47, %s63
      %p65 = scmp.eq.s32.totalorder %s18, 0
      %p66 = por %p64, %p65
      %s67 = ssub.s32 %s21, %s30
      %p68 = scmp.eq.s32.totalorder %s67, 0
      %s70 = sadd.s32 %s69, 1
      %s71 = scalar_select %p68, %s69, %s70
      %p74 = pneg %p68
      %p75 = scmp.eq.s32.totalorder %s12, 1
      %p76 = por %p74, %p75
      %p77 = scmp.ne.s32.totalorder %s69, %s72
      %p78 = scmp.eq.s32.totalorder %s12, 0
      %p79 = por %p77, %p78
      %p80 = scmp.ne.s32.totalorder %s69, %s72
      %p81 = scmp.eq.s32.totalorder %s17, 1
      %p82 = por %p80, %p81
      %p83 = scmp.ne.s32.totalorder %s72, %s73
      %p84 = scmp.eq.s32.totalorder %s17, 0
      %p85 = por %p83, %p84
      %p86 = scmp.ne.s32.totalorder %s72, %s73
      %p87 = scmp.eq.s32.totalorder %s18, 1
      %p88 = por %p86, %p87
      %p90 = scmp.ne.s32.totalorder %s73, %s89
      %p91 = scmp.eq.s32.totalorder %s18, 0
      %p92 = por %p90, %p91
      %s93 = ssub.s32 %s21, %s30
      %p94 = scmp.eq.s32.totalorder %s93, 0
      %s96 = sadd.s32 %s95, 1
      %s97 = scalar_select %p94, %s95, %s96
      %p100 = pneg %p94
      %p101 = scmp.eq.s32.totalorder %s12, 1
      %p102 = por %p100, %p101
      %p103 = scmp.ne.s32.totalorder %s95, %s98
      %p104 = scmp.eq.s32.totalorder %s12, 0
      %p105 = por %p103, %p104
      %p106 = scmp.ne.s32.totalorder %s95, %s98
      %p107 = scmp.eq.s32.totalorder %s17, 1
      %p108 = por %p106, %p107
      %p109 = scmp.ne.s32.totalorder %s98, %s99
      %p110 = scmp.eq.s32.totalorder %s17, 0
      %p111 = por %p109, %p110
      %p112 = scmp.ne.s32.totalorder %s98, %s99
      %p113 = scmp.eq.s32.totalorder %s18, 1
      %p114 = por %p112, %p113
      %p116 = scmp.ne.s32.totalorder %s99, %s115
      %p117 = scmp.eq.s32.totalorder %s18, 0
      %p118 = por %p116, %p117
      %s119 = ssub.s32 %s19, %s38
      %s120 = ssub.s32 %s21, %s30
      %s121 = sor.u32 %s119, %s120
      %s122 = ssub.s32 %s20, %s34
      %s123 = sor.u32 %s121, %s122
      %p124 = scmp.eq.s32.totalorder %s123, 0
      %s126 = sadd.s32 %s125, 1
      %s127 = scalar_select %p124, %s125, %s126
      %p130 = pneg %p124
      %p131 = scmp.eq.s32.totalorder %s12, 1
      %p132 = por %p130, %p131
      %p133 = scmp.ne.s32.totalorder %s125, %s128
      %p134 = scmp.eq.s32.totalorder %s12, 0
      %p135 = por %p133, %p134
      %p136 = scmp.ne.s32.totalorder %s125, %s128
      %p137 = scmp.eq.s32.totalorder %s17, 1
      %p138 = por %p136, %p137
      %p139 = scmp.ne.s32.totalorder %s128, %s129
      %p140 = scmp.eq.s32.totalorder %s17, 0
      %p141 = por %p139, %p140
      %p142 = scmp.ne.s32.totalorder %s128, %s129
      %p143 = scmp.eq.s32.totalorder %s18, 1
      %p144 = por %p142, %p143
      %p146 = scmp.ne.s32.totalorder %s129, %s145
      %p147 = scmp.eq.s32.totalorder %s18, 0
      %p148 = por %p146, %p147
      %p149 = scmp.le.s32.totalorder 1, %s12
      %p150 = scmp.lt.s32.totalorder %s12, 3
      %p151 = pnand %p149, %p150
      %p152 = pneg %p151
      // Predicated region
      $region9: #{tpu_custom_call.1} parent=5 // pred_check
        _
      $region10: #{tpu_custom_call.1} parent=5 // pred_check_branch
        %154 = sbr.rel (%p151) target = $region12
      $region11: #{tpu_custom_call.1} parent=5 // pred_region
        %s155 = ssub.s32 %s12, 1
        // Predicated region
        $region13: #{tpu_custom_call.1} parent=11 // pred_check
          %p156 = pneg %p85
        $region14: #{tpu_custom_call.1} parent=11 // pred_check_branch
          %158 = sbr.rel (%p156) target = $region16
        $region15: #{tpu_custom_call.1} parent=11 // pred_region
          %p159 = scmp.lt.s32.totalorder %s24, 0
          %s160 = scalar_select %p159, %s24, 0
          %s161 = smul.addr %s160, 8
          %s162 = scalar_lea.vmem %s1, %s161
        $region16: #{tpu_custom_call.1} parent=11 // pred_fallthru
          _
        // Predicated region
        $region17: #{tpu_custom_call.1} parent=11 // pred_check
          %p163 = pneg %p111
        $region18: #{tpu_custom_call.1} parent=11 // pred_check_branch
          %165 = sbr.rel (%p163) target = $region20
        $region19: #{tpu_custom_call.1} parent=11 // pred_region
          %p166 = scmp.lt.s32.totalorder %s24, 0
          %s167 = scalar_select %p166, %s24, 0
          %s168 = scalar_lea.vmem %s2, %s167
        $region20: #{tpu_custom_call.1} parent=11 // pred_fallthru
          _
      $region12: #{tpu_custom_call.1} parent=5 // pred_fallthru
        _
      %p169 = scmp.lt.s32.totalorder %s12, 2
      // Predicated region
      $region21: #{tpu_custom_call.1} parent=5 // pred_check
        %p170 = pneg %p169
      $region22: #{tpu_custom_call.1} parent=5 // pred_check_branch
        %172 = sbr.rel (%p170) target = $region24
      $region23: #{tpu_custom_call.1} parent=5 // pred_region
        // Predicated region
        $region25: #{tpu_custom_call.1} parent=23 // pred_check
          %p173 = pneg %p53
        $region26: #{tpu_custom_call.1} parent=23 // pred_check_branch
          %175 = sbr.rel (%p173) target = $region28
        $region27: #{tpu_custom_call.1} parent=23 // pred_region
          %s176 = sadd.s32 %s19, %s20
          %s177 = smul.u32 8, %s176
          %p178 = scmp.lt.s32.totalorder %s177, 15
          %s179 = scalar_select %p178, %s177, 15
          %s180 = smul.addr %s179, 2
          %s181 = smul.addr %s180, 8
          %s182 = scalar_lea.vmem %s0, %s181
          %s183 = sadd.s32 %s19, %s20
          %s184 = smul.u32 8, %s183
        $region28: #{tpu_custom_call.1} parent=23 // pred_fallthru
          _
      $region24: #{tpu_custom_call.1} parent=5 // pred_fallthru
        _
      %p185 = scmp.le.s32.totalorder 1, %s12
      %p186 = scmp.lt.s32.totalorder %s12, 3
      %p187 = pnand %p185, %p186
      %p188 = pneg %p187
      // Predicated region
      $region29: #{tpu_custom_call.1} parent=5 // pred_check
        _
      $region30: #{tpu_custom_call.1} parent=5 // pred_check_branch
        %190 = sbr.rel (%p187) target = $region32
      $region31: #{tpu_custom_call.1} parent=5 // pred_region
        %s191 = ssub.s32 %s12, 1
        %s192 = sadd.s32 %s22, %s23
        %s193 = smul.u32 8, %s192
        %p194 = scmp.lt.s32.totalorder %s193, 15
        %s195 = scalar_select %p194, %s193, 15
        %s196 = smul.addr %s195, 2
        %s197 = smul.addr %s196, 8
        %s198 = scalar_lea.vmem %s0, %s197
        %p199 = pneg %p59
        %p200 = pneg %p56
        %p201 = scmp.lt.s32.totalorder %s24, 0
        %s202 = scalar_select %p201, %s24, 0
        %s203 = smul.addr %s202, 8
        %s204 = scalar_lea.vmem %s1, %s203
        %p205 = pneg %p85
        %p206 = pneg %p82
        %p207 = scmp.lt.s32.totalorder %s24, 0
        %s208 = scalar_select %p207, %s24, 0
        %s209 = scalar_lea.vmem %s2, %s208
        %p210 = pneg %p111
        %p211 = pneg %p108
        %p212 = pneg %p141
        %p213 = pneg %p138
        %s214 = sand.u32 %s128, 1
        %s215 = scalar_lea.sflag [#allocation3], %s214
        %s216 = sand.u32 %s128, 1
        %s217 = smul.addr %s216, 8
        %s218 = scalar_lea.vmem [#allocation2], %s217
        %s219 = sadd.s32 %s22, %s23
        %s220 = smul.u32 8, %s219
        %p221 = scmp.lt.s32.totalorder %s220, 15
        %s222 = scalar_select %p221, %s220, 15
        %s223 = smul.addr %s222, 2
        %s224 = smul.addr %s223, 8
        %s225 = scalar_lea.vmem %s0, %s224
        %s226 = sadd.s32 %s22, %s23
        %s227 = smul.u32 8, %s226
        %p228 = scmp.lt.s32.totalorder %s24, 0
        %s229 = scalar_select %p228, %s24, 0
        %s230 = smul.addr %s229, 8
        %s231 = scalar_lea.vmem %s1, %s230
        %p232 = scmp.lt.s32.totalorder %s24, 0
        %s233 = scalar_select %p232, %s24, 0
        %s234 = scalar_lea.vmem %s2, %s233
        %v235 = vld [vmem:[%s225] sm:$0xff]
        %v236 = vld [vmem:[%s225 + $0x8] sm:$0xff]
        %v237 = vld [vmem:[%s225 + $0x10] sm:$0xff]
        %v238 = vld [vmem:[%s225 + $0x18] sm:$0xff]
        %v239 = vld [vmem:[%s225 + $0x20] sm:$0xff]
        %v240 = vld [vmem:[%s225 + $0x28] sm:$0xff]
        %v241 = vld [vmem:[%s225 + $0x30] sm:$0xff]
        %v242 = vld [vmem:[%s225 + $0x38] sm:$0xff]
        %v243 = vld [vmem:[%s225 + $0x40] sm:$0xff]
        %v244 = vld [vmem:[%s225 + $0x48] sm:$0xff]
        %v245 = vld [vmem:[%s225 + $0x50] sm:$0xff]
        %v246 = vld [vmem:[%s225 + $0x58] sm:$0xff]
        %v247 = vld [vmem:[%s225 + $0x60] sm:$0xff]
        %v248 = vld [vmem:[%s225 + $0x68] sm:$0xff]
        %v249 = vld [vmem:[%s225 + $0x70] sm:$0xff]
        %v250 = vld [vmem:[%s225 + $0x78] sm:$0xff]
        %vm251 = vcmask 31744
        %v252 = vsel %vm251, %v235, 0.0
        %253 = vadd.xlane.f32.xlu0 %v252
        %v254 = vpop.xlane.xlu0 %253
        %v255 = vsel %vm251, %v237, 0.0
        %256 = vadd.xlane.f32.xlu0 %v255
        %v257 = vpop.xlane.xlu0 %256
        %v258 = vsel %vm251, %v239, 0.0
        %259 = vadd.xlane.f32.xlu0 %v258
        %v260 = vpop.xlane.xlu0 %259
        %v261 = vsel %vm251, %v241, 0.0
        %262 = vadd.xlane.f32.xlu0 %v261
        %v263 = vpop.xlane.xlu0 %262
        %v264 = vsel %vm251, %v243, 0.0
        %265 = vadd.xlane.f32.xlu0 %v264
        %v266 = vpop.xlane.xlu0 %265
        %v267 = vsel %vm251, %v245, 0.0
        %268 = vadd.xlane.f32.xlu0 %v267
        %v269 = vpop.xlane.xlu0 %268
        %v270 = vsel %vm251, %v247, 0.0
        %271 = vadd.xlane.f32.xlu0 %v270
        %v272 = vpop.xlane.xlu0 %271
        %v273 = vsel %vm251, %v249, 0.0
        %274 = vadd.xlane.f32.xlu0 %v273
        %v275 = vpop.xlane.xlu0 %274
        %v276 = vrcp.pop 4.0
        %v277 = vmul.f32 %v254, %v276
        %v278 = vmul.f32 %v257, %v276
        %v279 = vmul.f32 %v260, %v276
        %v280 = vmul.f32 %v263, %v276
        %v281 = vmul.f32 %v266, %v276
        %v282 = vmul.f32 %v269, %v276
        %v283 = vmul.f32 %v272, %v276
        %v284 = vmul.f32 %v275, %v276
        %v285 = vsub.f32 %v235, %v277
        %v286 = vsub.f32 %v237, %v278
        %v287 = vsub.f32 %v239, %v279
        %v288 = vsub.f32 %v241, %v280
        %v289 = vsub.f32 %v243, %v281
        %v290 = vsub.f32 %v245, %v282
        %v291 = vsub.f32 %v247, %v283
        %v292 = vsub.f32 %v249, %v284
        %v293 = vmul.f32 %v285, %v285
        %v294 = vmul.f32 %v286, %v286
        %v295 = vmul.f32 %v287, %v287
        %v296 = vmul.f32 %v288, %v288
        %v297 = vmul.f32 %v289, %v289
        %v298 = vmul.f32 %v290, %v290
        %v299 = vmul.f32 %v291, %v291
        %v300 = vmul.f32 %v292, %v292
        %v301 = vsel %vm251, %v293, 0.0
        %302 = vadd.xlane.f32.xlu0 %v301
        %v303 = vpop.xlane.xlu0 %302
        %v304 = vsel %vm251, %v294, 0.0
        %305 = vadd.xlane.f32.xlu0 %v304
        %v306 = vpop.xlane.xlu0 %305
        %v307 = vsel %vm251, %v295, 0.0
        %308 = vadd.xlane.f32.xlu0 %v307
        %v309 = vpop.xlane.xlu0 %308
        %v310 = vsel %vm251, %v296, 0.0
        %311 = vadd.xlane.f32.xlu0 %v310
        %v312 = vpop.xlane.xlu0 %311
        %v313 = vsel %vm251, %v297, 0.0
        %314 = vadd.xlane.f32.xlu0 %v313
        %v315 = vpop.xlane.xlu0 %314
        %v316 = vsel %vm251, %v298, 0.0
        %317 = vadd.xlane.f32.xlu0 %v316
        %v318 = vpop.xlane.xlu0 %317
        %v319 = vsel %vm251, %v299, 0.0
        %320 = vadd.xlane.f32.xlu0 %v319
        %v321 = vpop.xlane.xlu0 %320
        %v322 = vsel %vm251, %v300, 0.0
        %323 = vadd.xlane.f32.xlu0 %v322
        %v324 = vpop.xlane.xlu0 %323
        %v325 = vmul.f32 %v303, %v276
        %v326 = vmul.f32 %v306, %v276
        %v327 = vmul.f32 %v309, %v276
        %v328 = vmul.f32 %v312, %v276
        %v329 = vmul.f32 %v315, %v276
        %v330 = vmul.f32 %v318, %v276
        %v331 = vmul.f32 %v321, %v276
        %v332 = vmul.f32 %v324, %v276
        %v333 = vadd.f32 %v325, 1e-05
        %v334 = vadd.f32 %v326, 1e-05
        %v335 = vadd.f32 %v327, 1e-05
        %v336 = vadd.f32 %v328, 1e-05
        %v337 = vadd.f32 %v329, 1e-05
        %v338 = vadd.f32 %v330, 1e-05
        %v339 = vadd.f32 %v331, 1e-05
        %v340 = vadd.f32 %v332, 1e-05
        %v341 = vrsqrt.pop %v333
        %v342 = vrsqrt.pop %v334
        %v343 = vrsqrt.pop %v335
        %v344 = vrsqrt.pop %v336
        %v345 = vrsqrt.pop %v337
        %v346 = vrsqrt.pop %v338
        %v347 = vrsqrt.pop %v339
        %v348 = vrsqrt.pop %v340
        %v349 = vmul.f32 %v285, %v341
        %v350 = vmul.f32 %v286, %v342
        %v351 = vmul.f32 %v287, %v343
        %v352 = vmul.f32 %v288, %v344
        %v353 = vmul.f32 %v289, %v345
        %v354 = vmul.f32 %v290, %v346
        %v355 = vmul.f32 %v291, %v347
        %v356 = vmul.f32 %v292, %v348
        %365 = vrot.lane.b32.xlu0 %v235, 124
        %v366 = vpop.permute.xlu0 %365
        %367 = vrot.lane.b32.xlu0 %v237, 124
        %v368 = vpop.permute.xlu0 %367
        %369 = vrot.lane.b32.xlu0 %v239, 124
        %v370 = vpop.permute.xlu0 %369
        %371 = vrot.lane.b32.xlu0 %v241, 124
        %v372 = vpop.permute.xlu0 %371
        %373 = vrot.lane.b32.xlu0 %v243, 124
        %v374 = vpop.permute.xlu0 %373
        %375 = vrot.lane.b32.xlu0 %v245, 124
        %v376 = vpop.permute.xlu0 %375
        %377 = vrot.lane.b32.xlu0 %v247, 124
        %v378 = vpop.permute.xlu0 %377
        %379 = vrot.lane.b32.xlu0 %v249, 124
        %v380 = vpop.permute.xlu0 %379
        %v389 = vsel %vm251, %v366, 0.0
        %390 = vadd.xlane.f32.xlu0 %v389
        %v391 = vpop.xlane.xlu0 %390
        %v392 = vsel %vm251, %v368, 0.0
        %393 = vadd.xlane.f32.xlu0 %v392
        %v394 = vpop.xlane.xlu0 %393
        %v395 = vsel %vm251, %v370, 0.0
        %396 = vadd.xlane.f32.xlu0 %v395
        %v397 = vpop.xlane.xlu0 %396
        %v398 = vsel %vm251, %v372, 0.0
        %399 = vadd.xlane.f32.xlu0 %v398
        %v400 = vpop.xlane.xlu0 %399
        %v401 = vsel %vm251, %v374, 0.0
        %402 = vadd.xlane.f32.xlu0 %v401
        %v403 = vpop.xlane.xlu0 %402
        %v404 = vsel %vm251, %v376, 0.0
        %405 = vadd.xlane.f32.xlu0 %v404
        %v406 = vpop.xlane.xlu0 %405
        %v407 = vsel %vm251, %v378, 0.0
        %408 = vadd.xlane.f32.xlu0 %v407
        %v409 = vpop.xlane.xlu0 %408
        %v410 = vsel %vm251, %v380, 0.0
        %411 = vadd.xlane.f32.xlu0 %v410
        %v412 = vpop.xlane.xlu0 %411
        %v413 = vmul.f32 %v391, %v276
        %v414 = vmul.f32 %v394, %v276
        %v415 = vmul.f32 %v397, %v276
        %v416 = vmul.f32 %v400, %v276
        %v417 = vmul.f32 %v403, %v276
        %v418 = vmul.f32 %v406, %v276
        %v419 = vmul.f32 %v409, %v276
        %v420 = vmul.f32 %v412, %v276
        %v421 = vsub.f32 %v235, %v413
        %v422 = vsub.f32 %v237, %v414
        %v423 = vsub.f32 %v239, %v415
        %v424 = vsub.f32 %v241, %v416
        %v425 = vsub.f32 %v243, %v417
        %v426 = vsub.f32 %v245, %v418
        %v427 = vsub.f32 %v247, %v419
        %v428 = vsub.f32 %v249, %v420
        %v429 = vmul.f32 %v421, %v421
        %v430 = vmul.f32 %v422, %v422
        %v431 = vmul.f32 %v423, %v423
        %v432 = vmul.f32 %v424, %v424
        %v433 = vmul.f32 %v425, %v425
        %v434 = vmul.f32 %v426, %v426
        %v435 = vmul.f32 %v427, %v427
        %v436 = vmul.f32 %v428, %v428
        %445 = vrot.lane.b32.xlu0 %v429, 124
        %v446 = vpop.permute.xlu0 %445
        %447 = vrot.lane.b32.xlu0 %v430, 124
        %v448 = vpop.permute.xlu0 %447
        %449 = vrot.lane.b32.xlu0 %v431, 124
        %v450 = vpop.permute.xlu0 %449
        %451 = vrot.lane.b32.xlu0 %v432, 124
        %v452 = vpop.permute.xlu0 %451
        %453 = vrot.lane.b32.xlu0 %v433, 124
        %v454 = vpop.permute.xlu0 %453
        %455 = vrot.lane.b32.xlu0 %v434, 124
        %v456 = vpop.permute.xlu0 %455
        %457 = vrot.lane.b32.xlu0 %v435, 124
        %v458 = vpop.permute.xlu0 %457
        %459 = vrot.lane.b32.xlu0 %v436, 124
        %v460 = vpop.permute.xlu0 %459
        %v469 = vsel %vm251, %v446, 0.0
        %470 = vadd.xlane.f32.xlu0 %v469
        %v471 = vpop.xlane.xlu0 %470
        %v472 = vsel %vm251, %v448, 0.0
        %473 = vadd.xlane.f32.xlu0 %v472
        %v474 = vpop.xlane.xlu0 %473
        %v475 = vsel %vm251, %v450, 0.0
        %476 = vadd.xlane.f32.xlu0 %v475
        %v477 = vpop.xlane.xlu0 %476
        %v478 = vsel %vm251, %v452, 0.0
        %479 = vadd.xlane.f32.xlu0 %v478
        %v480 = vpop.xlane.xlu0 %479
        %v481 = vsel %vm251, %v454, 0.0
        %482 = vadd.xlane.f32.xlu0 %v481
        %v483 = vpop.xlane.xlu0 %482
        %v484 = vsel %vm251, %v456, 0.0
        %485 = vadd.xlane.f32.xlu0 %v484
        %v486 = vpop.xlane.xlu0 %485
        %v487 = vsel %vm251, %v458, 0.0
        %488 = vadd.xlane.f32.xlu0 %v487
        %v489 = vpop.xlane.xlu0 %488
        %v490 = vsel %vm251, %v460, 0.0
        %491 = vadd.xlane.f32.xlu0 %v490
        %v492 = vpop.xlane.xlu0 %491
        %v493 = vmul.f32 %v471, %v276
        %v494 = vmul.f32 %v474, %v276
        %v495 = vmul.f32 %v477, %v276
        %v496 = vmul.f32 %v480, %v276
        %v497 = vmul.f32 %v483, %v276
        %v498 = vmul.f32 %v486, %v276
        %v499 = vmul.f32 %v489, %v276
        %v500 = vmul.f32 %v492, %v276
        %v501 = vadd.f32 %v493, 1e-05
        %v502 = vadd.f32 %v494, 1e-05
        %v503 = vadd.f32 %v495, 1e-05
        %v504 = vadd.f32 %v496, 1e-05
        %v505 = vadd.f32 %v497, 1e-05
        %v506 = vadd.f32 %v498, 1e-05
        %v507 = vadd.f32 %v499, 1e-05
        %v508 = vadd.f32 %v500, 1e-05
        %v509 = vrsqrt.pop %v501
        %v510 = vrsqrt.pop %v502
        %v511 = vrsqrt.pop %v503
        %v512 = vrsqrt.pop %v504
        %v513 = vrsqrt.pop %v505
        %v514 = vrsqrt.pop %v506
        %v515 = vrsqrt.pop %v507
        %v516 = vrsqrt.pop %v508
        %v517 = vmul.f32 %v421, %v509
        %v518 = vmul.f32 %v422, %v510
        %v519 = vmul.f32 %v423, %v511
        %v520 = vmul.f32 %v424, %v512
        %v521 = vmul.f32 %v425, %v513
        %v522 = vmul.f32 %v426, %v514
        %v523 = vmul.f32 %v427, %v515
        %v524 = vmul.f32 %v428, %v516
        %v525 = vsel %vm251, %v236, 0.0
        %526 = vadd.xlane.f32.xlu0 %v525
        %v527 = vpop.xlane.xlu0 %526
        %v528 = vsel %vm251, %v238, 0.0
        %529 = vadd.xlane.f32.xlu0 %v528
        %v530 = vpop.xlane.xlu0 %529
        %v531 = vsel %vm251, %v240, 0.0
        %532 = vadd.xlane.f32.xlu0 %v531
        %v533 = vpop.xlane.xlu0 %532
        %v534 = vsel %vm251, %v242, 0.0
        %535 = vadd.xlane.f32.xlu0 %v534
        %v536 = vpop.xlane.xlu0 %535
        %v537 = vsel %vm251, %v244, 0.0
        %538 = vadd.xlane.f32.xlu0 %v537
        %v539 = vpop.xlane.xlu0 %538
        %v540 = vsel %vm251, %v246, 0.0
        %541 = vadd.xlane.f32.xlu0 %v540
        %v542 = vpop.xlane.xlu0 %541
        %v543 = vsel %vm251, %v248, 0.0
        %544 = vadd.xlane.f32.xlu0 %v543
        %v545 = vpop.xlane.xlu0 %544
        %v546 = vsel %vm251, %v250, 0.0
        %547 = vadd.xlane.f32.xlu0 %v546
        %v548 = vpop.xlane.xlu0 %547
        %v549 = vmul.f32 %v527, %v276
        %v550 = vmul.f32 %v530, %v276
        %v551 = vmul.f32 %v533, %v276
        %v552 = vmul.f32 %v536, %v276
        %v553 = vmul.f32 %v539, %v276
        %v554 = vmul.f32 %v542, %v276
        %v555 = vmul.f32 %v545, %v276
        %v556 = vmul.f32 %v548, %v276
        %v557 = vsub.f32 %v236, %v549
        %v558 = vsub.f32 %v238, %v550
        %v559 = vsub.f32 %v240, %v551
        %v560 = vsub.f32 %v242, %v552
        %v561 = vsub.f32 %v244, %v553
        %v562 = vsub.f32 %v246, %v554
        %v563 = vsub.f32 %v248, %v555
        %v564 = vsub.f32 %v250, %v556
        %v565 = vmul.f32 %v557, %v557
        %v566 = vmul.f32 %v558, %v558
        %v567 = vmul.f32 %v559, %v559
        %v568 = vmul.f32 %v560, %v560
        %v569 = vmul.f32 %v561, %v561
        %v570 = vmul.f32 %v562, %v562
        %v571 = vmul.f32 %v563, %v563
        %v572 = vmul.f32 %v564, %v564
        %v573 = vsel %vm251, %v565, 0.0
        %574 = vadd.xlane.f32.xlu0 %v573
        %v575 = vpop.xlane.xlu0 %574
        %v576 = vsel %vm251, %v566, 0.0
        %577 = vadd.xlane.f32.xlu0 %v576
        %v578 = vpop.xlane.xlu0 %577
        %v579 = vsel %vm251, %v567, 0.0
        %580 = vadd.xlane.f32.xlu0 %v579
        %v581 = vpop.xlane.xlu0 %580
        %v582 = vsel %vm251, %v568, 0.0
        %583 = vadd.xlane.f32.xlu0 %v582
        %v584 = vpop.xlane.xlu0 %583
        %v585 = vsel %vm251, %v569, 0.0
        %586 = vadd.xlane.f32.xlu0 %v585
        %v587 = vpop.xlane.xlu0 %586
        %v588 = vsel %vm251, %v570, 0.0
        %589 = vadd.xlane.f32.xlu0 %v588
        %v590 = vpop.xlane.xlu0 %589
        %v591 = vsel %vm251, %v571, 0.0
        %592 = vadd.xlane.f32.xlu0 %v591
        %v593 = vpop.xlane.xlu0 %592
        %v594 = vsel %vm251, %v572, 0.0
        %595 = vadd.xlane.f32.xlu0 %v594
        %v596 = vpop.xlane.xlu0 %595
        %v597 = vmul.f32 %v575, %v276
        %v598 = vmul.f32 %v578, %v276
        %v599 = vmul.f32 %v581, %v276
        %v600 = vmul.f32 %v584, %v276
        %v601 = vmul.f32 %v587, %v276
        %v602 = vmul.f32 %v590, %v276
        %v603 = vmul.f32 %v593, %v276
        %v604 = vmul.f32 %v596, %v276
        %v605 = vadd.f32 %v597, 1e-05
        %v606 = vadd.f32 %v598, 1e-05
        %v607 = vadd.f32 %v599, 1e-05
        %v608 = vadd.f32 %v600, 1e-05
        %v609 = vadd.f32 %v601, 1e-05
        %v610 = vadd.f32 %v602, 1e-05
        %v611 = vadd.f32 %v603, 1e-05
        %v612 = vadd.f32 %v604, 1e-05
        %v613 = vrsqrt.pop %v605
        %v614 = vrsqrt.pop %v606
        %v615 = vrsqrt.pop %v607
        %v616 = vrsqrt.pop %v608
        %v617 = vrsqrt.pop %v609
        %v618 = vrsqrt.pop %v610
        %v619 = vrsqrt.pop %v611
        %v620 = vrsqrt.pop %v612
        %v621 = vmul.f32 %v557, %v613
        %v622 = vmul.f32 %v558, %v614
        %v623 = vmul.f32 %v559, %v615
        %v624 = vmul.f32 %v560, %v616
        %v625 = vmul.f32 %v561, %v617
        %v626 = vmul.f32 %v562, %v618
        %v627 = vmul.f32 %v563, %v619
        %v628 = vmul.f32 %v564, %v620
        %637 = vrot.lane.b32.xlu0 %v236, 124
        %v638 = vpop.permute.xlu0 %637
        %639 = vrot.lane.b32.xlu0 %v238, 124
        %v640 = vpop.permute.xlu0 %639
        %641 = vrot.lane.b32.xlu0 %v240, 124
        %v642 = vpop.permute.xlu0 %641
        %643 = vrot.lane.b32.xlu0 %v242, 124
        %v644 = vpop.permute.xlu0 %643
        %645 = vrot.lane.b32.xlu0 %v244, 124
        %v646 = vpop.permute.xlu0 %645
        %647 = vrot.lane.b32.xlu0 %v246, 124
        %v648 = vpop.permute.xlu0 %647
        %649 = vrot.lane.b32.xlu0 %v248, 124
        %v650 = vpop.permute.xlu0 %649
        %651 = vrot.lane.b32.xlu0 %v250, 124
        %v652 = vpop.permute.xlu0 %651
        %v661 = vsel %vm251, %v638, 0.0
        %662 = vadd.xlane.f32.xlu0 %v661
        %v663 = vpop.xlane.xlu0 %662
        %v664 = vsel %vm251, %v640, 0.0
        %665 = vadd.xlane.f32.xlu0 %v664
        %v666 = vpop.xlane.xlu0 %665
        %v667 = vsel %vm251, %v642, 0.0
        %668 = vadd.xlane.f32.xlu0 %v667
        %v669 = vpop.xlane.xlu0 %668
        %v670 = vsel %vm251, %v644, 0.0
        %671 = vadd.xlane.f32.xlu0 %v670
        %v672 = vpop.xlane.xlu0 %671
        %v673 = vsel %vm251, %v646, 0.0
        %674 = vadd.xlane.f32.xlu0 %v673
        %v675 = vpop.xlane.xlu0 %674
        %v676 = vsel %vm251, %v648, 0.0
        %677 = vadd.xlane.f32.xlu0 %v676
        %v678 = vpop.xlane.xlu0 %677
        %v679 = vsel %vm251, %v650, 0.0
        %680 = vadd.xlane.f32.xlu0 %v679
        %v681 = vpop.xlane.xlu0 %680
        %v682 = vsel %vm251, %v652, 0.0
        %683 = vadd.xlane.f32.xlu0 %v682
        %v684 = vpop.xlane.xlu0 %683
        %v685 = vmul.f32 %v663, %v276
        %v686 = vmul.f32 %v666, %v276
        %v687 = vmul.f32 %v669, %v276
        %v688 = vmul.f32 %v672, %v276
        %v689 = vmul.f32 %v675, %v276
        %v690 = vmul.f32 %v678, %v276
        %v691 = vmul.f32 %v681, %v276
        %v692 = vmul.f32 %v684, %v276
        %v693 = vsub.f32 %v236, %v685
        %v694 = vsub.f32 %v238, %v686
        %v695 = vsub.f32 %v240, %v687
        %v696 = vsub.f32 %v242, %v688
        %v697 = vsub.f32 %v244, %v689
        %v698 = vsub.f32 %v246, %v690
        %v699 = vsub.f32 %v248, %v691
        %v700 = vsub.f32 %v250, %v692
        %v701 = vmul.f32 %v693, %v693
        %v702 = vmul.f32 %v694, %v694
        %v703 = vmul.f32 %v695, %v695
        %v704 = vmul.f32 %v696, %v696
        %v705 = vmul.f32 %v697, %v697
        %v706 = vmul.f32 %v698, %v698
        %v707 = vmul.f32 %v699, %v699
        %v708 = vmul.f32 %v700, %v700
        %717 = vrot.lane.b32.xlu0 %v701, 124
        %v718 = vpop.permute.xlu0 %717
        %719 = vrot.lane.b32.xlu0 %v702, 124
        %v720 = vpop.permute.xlu0 %719
        %721 = vrot.lane.b32.xlu0 %v703, 124
        %v722 = vpop.permute.xlu0 %721
        %723 = vrot.lane.b32.xlu0 %v704, 124
        %v724 = vpop.permute.xlu0 %723
        %725 = vrot.lane.b32.xlu0 %v705, 124
        %v726 = vpop.permute.xlu0 %725
        %727 = vrot.lane.b32.xlu0 %v706, 124
        %v728 = vpop.permute.xlu0 %727
        %729 = vrot.lane.b32.xlu0 %v707, 124
        %v730 = vpop.permute.xlu0 %729
        %731 = vrot.lane.b32.xlu0 %v708, 124
        %v732 = vpop.permute.xlu0 %731
        %v741 = vsel %vm251, %v718, 0.0
        %742 = vadd.xlane.f32.xlu0 %v741
        %v743 = vpop.xlane.xlu0 %742
        %v744 = vsel %vm251, %v720, 0.0
        %745 = vadd.xlane.f32.xlu0 %v744
        %v746 = vpop.xlane.xlu0 %745
        %v747 = vsel %vm251, %v722, 0.0
        %748 = vadd.xlane.f32.xlu0 %v747
        %v749 = vpop.xlane.xlu0 %748
        %v750 = vsel %vm251, %v724, 0.0
        %751 = vadd.xlane.f32.xlu0 %v750
        %v752 = vpop.xlane.xlu0 %751
        %v753 = vsel %vm251, %v726, 0.0
        %754 = vadd.xlane.f32.xlu0 %v753
        %v755 = vpop.xlane.xlu0 %754
        %v756 = vsel %vm251, %v728, 0.0
        %757 = vadd.xlane.f32.xlu0 %v756
        %v758 = vpop.xlane.xlu0 %757
        %v759 = vsel %vm251, %v730, 0.0
        %760 = vadd.xlane.f32.xlu0 %v759
        %v761 = vpop.xlane.xlu0 %760
        %v762 = vsel %vm251, %v732, 0.0
        %763 = vadd.xlane.f32.xlu0 %v762
        %v764 = vpop.xlane.xlu0 %763
        %v765 = vmul.f32 %v743, %v276
        %v766 = vmul.f32 %v746, %v276
        %v767 = vmul.f32 %v749, %v276
        %v768 = vmul.f32 %v752, %v276
        %v769 = vmul.f32 %v755, %v276
        %v770 = vmul.f32 %v758, %v276
        %v771 = vmul.f32 %v761, %v276
        %v772 = vmul.f32 %v764, %v276
        %v773 = vadd.f32 %v765, 1e-05
        %v774 = vadd.f32 %v766, 1e-05
        %v775 = vadd.f32 %v767, 1e-05
        %v776 = vadd.f32 %v768, 1e-05
        %v777 = vadd.f32 %v769, 1e-05
        %v778 = vadd.f32 %v770, 1e-05
        %v779 = vadd.f32 %v771, 1e-05
        %v780 = vadd.f32 %v772, 1e-05
        %v781 = vrsqrt.pop %v773
        %v782 = vrsqrt.pop %v774
        %v783 = vrsqrt.pop %v775
        %v784 = vrsqrt.pop %v776
        %v785 = vrsqrt.pop %v777
        %v786 = vrsqrt.pop %v778
        %v787 = vrsqrt.pop %v779
        %v788 = vrsqrt.pop %v780
        %v789 = vmul.f32 %v693, %v781
        %v790 = vmul.f32 %v694, %v782
        %v791 = vmul.f32 %v695, %v783
        %v792 = vmul.f32 %v696, %v784
        %v793 = vmul.f32 %v697, %v785
        %v794 = vmul.f32 %v698, %v786
        %v795 = vmul.f32 %v699, %v787
        %v796 = vmul.f32 %v700, %v788
        %805 = vrot.lane.b32.xlu0 %v621, 8
        %v806 = vpop.permute.xlu0 %805
        %807 = vrot.lane.b32.xlu0 %v622, 8
        %v808 = vpop.permute.xlu0 %807
        %809 = vrot.lane.b32.xlu0 %v623, 8
        %v810 = vpop.permute.xlu0 %809
        %811 = vrot.lane.b32.xlu0 %v624, 8
        %v812 = vpop.permute.xlu0 %811
        %813 = vrot.lane.b32.xlu0 %v625, 8
        %v814 = vpop.permute.xlu0 %813
        %815 = vrot.lane.b32.xlu0 %v626, 8
        %v816 = vpop.permute.xlu0 %815
        %817 = vrot.lane.b32.xlu0 %v627, 8
        %v818 = vpop.permute.xlu0 %817
        %819 = vrot.lane.b32.xlu0 %v628, 8
        %v820 = vpop.permute.xlu0 %819
        %837 = vrot.lane.b32.xlu0 %v789, 8
        %v838 = vpop.permute.xlu0 %837
        %839 = vrot.lane.b32.xlu0 %v790, 8
        %v840 = vpop.permute.xlu0 %839
        %841 = vrot.lane.b32.xlu0 %v791, 8
        %v842 = vpop.permute.xlu0 %841
        %843 = vrot.lane.b32.xlu0 %v792, 8
        %v844 = vpop.permute.xlu0 %843
        %845 = vrot.lane.b32.xlu0 %v793, 8
        %v846 = vpop.permute.xlu0 %845
        %847 = vrot.lane.b32.xlu0 %v794, 8
        %v848 = vpop.permute.xlu0 %847
        %849 = vrot.lane.b32.xlu0 %v795, 8
        %v850 = vpop.permute.xlu0 %849
        %851 = vrot.lane.b32.xlu0 %v796, 8
        %v852 = vpop.permute.xlu0 %851
        %v861 = vsel %vm251, %v349, %v517
        %v862 = vsel %vm251, %v350, %v518
        %v863 = vsel %vm251, %v351, %v519
        %v864 = vsel %vm251, %v352, %v520
        %v865 = vsel %vm251, %v353, %v521
        %v866 = vsel %vm251, %v354, %v522
        %v867 = vsel %vm251, %v355, %v523
        %v868 = vsel %vm251, %v356, %v524
        %vm869 = vcmask 64512
        %v870 = vsel %vm869, %v861, %v806
        %v871 = vsel %vm869, %v862, %v808
        %v872 = vsel %vm869, %v863, %v810
        %v873 = vsel %vm869, %v864, %v812
        %v874 = vsel %vm869, %v865, %v814
        %v875 = vsel %vm869, %v866, %v816
        %v876 = vsel %vm869, %v867, %v818
        %v877 = vsel %vm869, %v868, %v820
        %vm878 = vcmask 97280
        %v879 = vsel %vm878, %v870, %v838
        %v880 = vsel %vm878, %v871, %v840
        %v881 = vsel %vm878, %v872, %v842
        %v882 = vsel %vm878, %v873, %v844
        %v883 = vsel %vm878, %v874, %v846
        %v884 = vsel %vm878, %v875, %v848
        %v885 = vsel %vm878, %v876, %v850
        %v886 = vsel %vm878, %v877, %v852
        %v887 = vld [vmem:[%s231] sm:$0xff]
        %v888 = vld [vmem:[%s231 + $0x8] sm:$0xff]
        %v889 = vld [vmem:[%s234] sm:$0x1]
        %v891 = vlaneseq
        %v892 = vshrl.u32 %v891, 7
        %v893 = vsub.s32 0, %v892
        %v894 = vrot.slane %v889, %v893
        %vm896 = vcmask 130048
        %v898 = vsel %vm896, %v879, 0
        %v901 = vsel %vm896, %v880, 0
        %v904 = vsel %vm896, %v881, 0
        %v907 = vsel %vm896, %v882, 0
        %v910 = vsel %vm896, %v883, 0
        %v913 = vsel %vm896, %v884, 0
        %v916 = vsel %vm896, %v885, 0
        %v919 = vsel %vm896, %v886, 0
        %921 = vmatprep.subr.mxu0 0.0
        %922 = vmatpush1.msra.mxu0 0.0
        %923 = vmatprep.subr.mxu0 0.0
        %924 = vmatpush1.msra.mxu0 0.0
        %925 = vmatprep.subr.mxu0 0.0
        %926 = vmatpush1.msra.mxu0 0.0
        %927 = vmatprep.subr.mxu0 0.0
        %928 = vmatpush1.msra.mxu0 0.0
        %929 = vmatprep.subr.mxu0 0.0
        %930 = vmatpush1.msra.mxu0 0.0
        %931 = vmatprep.subr.mxu0 0.0
        %932 = vmatpush1.msra.mxu0 0.0
        %933 = vmatprep.subr.mxu0 0.0
        %934 = vmatpush1.msra.mxu0 0.0
        %935 = vmatprep.subr.mxu0 0.0
        %936 = vmatpush1.msra.mxu0 0.0
        %937 = vmatprep.subr.mxu0 0.0
        %938 = vmatpush1.msra.mxu0 0.0
        %939 = vmatprep.subr.mxu0 0.0
        %940 = vmatpush1.msra.mxu0 0.0
        %941 = vmatprep.subr.mxu0 0.0
        %942 = vmatpush1.msra.mxu0 0.0
        %943 = vmatprep.subr.mxu0 0.0
        %944 = vmatpush1.msra.mxu0 0.0
        %945 = vmatprep.subr.mxu0 0.0
        %946 = vmatpush1.msra.mxu0 0.0
        %947 = vmatprep.subr.mxu0 0.0
        %948 = vmatpush1.msra.mxu0 0.0
        %949 = vmatprep.subr.mxu0 0.0
        %950 = vmatpush1.msra.mxu0 %v888
        %951 = vmatprep.subr.mxu0 0.0
        %952 = vmatpush1.msra.mxu0 %v887
        %953 = vmatprep.subr.mxu0 0.0
        %954 = vmatpush2.msra.mxu0 0.0
        %955 = vmatprep.subr.mxu0 0.0
        %956 = vmatpush2.msra.mxu0 0.0
        %957 = vmatprep.subr.mxu0 0.0
        %958 = vmatpush2.msra.mxu0 0.0
        %959 = vmatprep.subr.mxu0 0.0
        %960 = vmatpush2.msra.mxu0 0.0
        %961 = vmatprep.subr.mxu0 0.0
        %962 = vmatpush2.msra.mxu0 0.0
        %963 = vmatprep.subr.mxu0 0.0
        %964 = vmatpush2.msra.mxu0 0.0
        %965 = vmatprep.subr.mxu0 0.0
        %966 = vmatpush2.msra.mxu0 0.0
        %967 = vmatprep.subr.mxu0 0.0
        %968 = vmatpush2.msra.mxu0 0.0
        %969 = vmatprep.subr.mxu0 0.0
        %970 = vmatpush2.msra.mxu0 0.0
        %971 = vmatprep.subr.mxu0 0.0
        %972 = vmatpush2.msra.mxu0 0.0
        %973 = vmatprep.subr.mxu0 0.0
        %974 = vmatpush2.msra.mxu0 0.0
        %975 = vmatprep.subr.mxu0 0.0
        %976 = vmatpush2.msra.mxu0 0.0
        %977 = vmatprep.subr.mxu0 0.0
        %978 = vmatpush2.msra.mxu0 0.0
        %979 = vmatprep.subr.mxu0 0.0
        %980 = vmatpush2.msra.mxu0 0.0
        %981 = vmatprep.subr.mxu0 0.0
        %982 = vmatpush2.msra.mxu0 0.0
        %983 = vmatprep.subr.mxu0 0.0
        %984 = vmatpush2.msra.mxu0 0.0
        %985 = vmatprep.mubr.f32.mxu0 0.0
        %986 = vmatmul.mubr.f32.gmra.mxu0 %v898
        %v987 = vpop.f32.mrf.mxu0
        %v988 = vadd.f32 %v894, %v987
        %v989 = vpop.f32.mrf.mxu0
        %990 = vmatprep.mubr.f32.mxu0 0.0
        %991 = vmatmul.mubr.f32.gmra.mxu0 %v901
        %v992 = vpop.f32.mrf.mxu0
        %v993 = vadd.f32 %v894, %v992
        %v994 = vpop.f32.mrf.mxu0
        %995 = vmatprep.mubr.f32.mxu0 0.0
        %996 = vmatmul.mubr.f32.gmra.mxu0 %v904
        %v997 = vpop.f32.mrf.mxu0
        %v998 = vadd.f32 %v894, %v997
        %v999 = vpop.f32.mrf.mxu0
        %1000 = vmatprep.mubr.f32.mxu0 0.0
        %1001 = vmatmul.mubr.f32.gmra.mxu0 %v907
        %v1002 = vpop.f32.mrf.mxu0
        %v1003 = vadd.f32 %v894, %v1002
        %v1004 = vpop.f32.mrf.mxu0
        %1005 = vmatprep.mubr.f32.mxu0 0.0
        %1006 = vmatmul.mubr.f32.gmra.mxu0 %v910
        %v1007 = vpop.f32.mrf.mxu0
        %v1008 = vadd.f32 %v894, %v1007
        %v1009 = vpop.f32.mrf.mxu0
        %1010 = vmatprep.mubr.f32.mxu0 0.0
        %1011 = vmatmul.mubr.f32.gmra.mxu0 %v913
        %v1012 = vpop.f32.mrf.mxu0
        %v1013 = vadd.f32 %v894, %v1012
        %v1014 = vpop.f32.mrf.mxu0
        %1015 = vmatprep.mubr.f32.mxu0 0.0
        %1016 = vmatmul.mubr.f32.gmra.mxu0 %v916
        %v1017 = vpop.f32.mrf.mxu0
        %v1018 = vadd.f32 %v894, %v1017
        %v1019 = vpop.f32.mrf.mxu0
        %1020 = vmatprep.mubr.f32.mxu0 0.0
        %1021 = vmatmul.mubr.f32.gmra.mxu0 %v919
        %v1022 = vpop.f32.mrf.mxu0
        %v1023 = vadd.f32 %v894, %v1022
        %v1024 = vpop.f32.mrf.mxu0
        %1025 = vdwg.mxu0
        %1026 = vxpose.xlu0.b32.start [1/16] %v988, 128
        %1027 = vxpose.xlu0.b32.cont [2/16] %v993, 128
        %1028 = vxpose.xlu0.b32.cont [3/16] %v998, 128
        %1029 = vxpose.xlu0.b32.cont [4/16] %v1003, 128
        %1030 = vxpose.xlu0.b32.cont [5/16] %v1008, 128
        %1031 = vxpose.xlu0.b32.cont [6/16] %v1013, 128
        %1032 = vxpose.xlu0.b32.cont [7/16] %v1018, 128
        %1033 = vxpose.xlu0.b32.cont [8/16] %v1023, 128
        %1034 = vxpose.xlu0.b32.cont [9/16] 0.0, 128
        %1035 = vxpose.xlu0.b32.cont [10/16] 0.0, 128
        %1036 = vxpose.xlu0.b32.cont [11/16] 0.0, 128
        %1037 = vxpose.xlu0.b32.cont [12/16] 0.0, 128
        %1038 = vxpose.xlu0.b32.cont [13/16] 0.0, 128
        %1039 = vxpose.xlu0.b32.cont [14/16] 0.0, 128
        %1040 = vxpose.xlu0.b32.cont [15/16] 0.0, 128
        %1041 = vxpose.xlu0.b32.end [16/16] 0.0, 128
        %v1042 = vpop.trf.xlu0
        %v1043 = vpop.trf.xlu0
        %v1044 = vpop.trf.xlu0
        %v1045 = vpop.trf.xlu0
        %v1046 = vpop.trf.xlu0
        %v1047 = vpop.trf.xlu0
        %v1048 = vpop.trf.xlu0
        %v1049 = vpop.trf.xlu0
        %v1050 = vpop.trf.xlu0
        %v1051 = vpop.trf.xlu0
        %v1052 = vpop.trf.xlu0
        %v1053 = vpop.trf.xlu0
        %v1054 = vpop.trf.xlu0
        %v1055 = vpop.trf.xlu0
        %v1056 = vpop.trf.xlu0
        %v1057 = vpop.trf.xlu0
        %vm1058 = vcmask 523264
        %1059 = vst.msk [vmem:[%s218] sm:$0xff] %vm1058, %v1042
        %s1060 = sand.u32 %s128, 1
        %s1061 = scalar_lea.sflag [#allocation3], %s1060
        %s1062 = sand.u32 %s128, 1
        %s1063 = smul.addr %s1062, 8
        %s1064 = scalar_lea.vmem [#allocation2], %s1063
        // Predicated region
        $region33: #{tpu_custom_call.1} parent=31 // pred_check
          %p1065 = pneg %p138
        $region34: #{tpu_custom_call.1} parent=31 // pred_check_branch
          %1067 = sbr.rel (%p1065) target = $region36
        $region35: #{tpu_custom_call.1} parent=31 // pred_region
          %s1069 = ssub.s32 128, 128
          %1070 = vsyncadd %s1061, %s1069
          %s1071 = sadd.s32 %s23, %s24
          %s1072 = sadd.s32 %s1071, %s22
          %s1073 = smul.addr %s1072, 128
          %s1074 = scalar_lea.hbm %s3, %s1073
          %s1076 = sshll.u32 %s1064, 4
          %s1077 = int_to_ptr.vmem [resolvable:$true] %s1076
          %1079 = dma.vmem_to_hbm [thread:$0]  %s1077, 128, %s1074, %s1061
        $region36: #{tpu_custom_call.1} parent=31 // pred_fallthru
          _
      $region32: #{tpu_custom_call.1} parent=5 // pred_fallthru
        _
      %p1080 = scmp.le.s32.totalorder 2, %s12
      // Predicated region
      $region37: #{tpu_custom_call.1} parent=5 // pred_check
        %p1081 = pneg %p1080
      $region38: #{tpu_custom_call.1} parent=5 // pred_check_branch
        %1083 = sbr.rel (%p1081) target = $region40
      $region39: #{tpu_custom_call.1} parent=5 // pred_region
        %s1084 = ssub.s32 %s12, 2
        // Predicated region
        $region41: #{tpu_custom_call.1} parent=39 // pred_check
          %p1085 = pneg %p144
        $region42: #{tpu_custom_call.1} parent=39 // pred_check_branch
          %1087 = sbr.rel (%p1085) target = $region44
        $region43: #{tpu_custom_call.1} parent=39 // pred_region
          %s1088 = sand.u32 %s129, 1
          %s1089 = scalar_lea.sflag [#allocation3], %s1088
          %s1090 = sand.u32 %s129, 1
          %s1091 = smul.addr %s1090, 8
          %s1092 = scalar_lea.vmem [#allocation2], %s1091
          %1093 = dma.done %s1089, 128
        $region44: #{tpu_custom_call.1} parent=39 // pred_fallthru
          _
      $region40: #{tpu_custom_call.1} parent=5 // pred_fallthru
        _
    $region6: #{tpu_custom_call.1} parent=1 // loop_footer
      %s16 = sadd.s32 1, %s12
    $region7: #{tpu_custom_call.1} parent=1 // loop_footer_branch
      %11 = sbr.rel target = $region3
    $region8: #{tpu_custom_call.1} parent=1 // loop_exit
      _
    %1094 = vsyncpa [#allocation3], 1
    %s1095 = scalar_lea.sflag [#allocation3], 1
    %1096 = vsyncpa %s1095, 1

</llo_original>
